<compile_context>
chip_gen: v5e
topology: v5e:2x2
jax: 0.10.0
libtpu: 0.0.40
codegen_flags: <defaults>
</compile_context>

<pallas_src>
import functools

import jax
import jax.numpy as jnp
from jax.experimental import pallas as pl
from jax.experimental.pallas import tpu as pltpu


def _round_up(x, m):
    return ((x + m - 1) // m) * m


# --------------------------------------------------------------- kernels ----
def _linear_kernel(x_ref, w_ref, o_ref):
    # Single K tile: one MXU contraction straight into the output block
    # (no accumulator scratch, no init/finalize phases).
    o_ref[...] = jnp.dot(
        x_ref[...], w_ref[...], preferred_element_type=jnp.float32
    ).astype(o_ref.dtype)


def _linear_kernel_acc(x_ref, w_ref, o_ref, acc_ref):
    # K split over grid axis 2 (innermost, "arbitrary"): accumulate in f32.
    @pl.when(pl.program_id(2) == 0)
    def _():
        acc_ref[...] = jnp.zeros_like(acc_ref)

    acc_ref[...] += jnp.dot(
        x_ref[...], w_ref[...], preferred_element_type=jnp.float32
    )

    @pl.when(pl.program_id(2) == pl.num_programs(2) - 1)
    def _():
        o_ref[...] = acc_ref[...].astype(o_ref.dtype)


# --------------------------------------------------- per-chip VMEM budgets ----
_VMEM_FALLBACK = 64 * 1024 * 1024  # assume the smallest (v7x per-TC) VMEM


@functools.lru_cache(maxsize=None)
def _vmem_limit_bytes():
    cap = 0
    try:
        cap = int(pltpu.get_tpu_info().vmem_capacity_bytes)
    except Exception:
        cap = 0
    if cap <= 0:
        cap = _VMEM_FALLBACK
    # Leave headroom for Mosaic-internal scratch; v5e/v6e -> 96 MiB, v7x -> 48 MiB.
    return min((cap * 3) // 4, 112 * 1024 * 1024)


def _pick_tiles(M, N, K, in_itemsize, out_itemsize, *,
                budget, resident_cap, tm_target, tn_target, max_single_k):
    m_align = 8 if in_itemsize >= 4 else 16
    np128 = _round_up(N, 128)

    # --- K: prefer one full-K tile (weight fetched once, no accumulator).
    #     The reduction axis is always presented 128-aligned (explicit zero pad
    #     in the wrapper when mono_dim is ragged) so no garbage enters the sum.
    k_pad = K if K % 128 == 0 else _round_up(K, 128)
    if K <= max_single_k:
        tk = k_pad
    else:
        cap = max(128, min(2048, max_single_k))
        tk, d = 128, 256
        while d <= cap:                      # largest 128-multiple dividing k_pad
            if k_pad % d == 0:
                tk = d
            d += 128
    grid_k = k_pad // tk

    # --- N: keep the whole (double-buffered) weight resident in VMEM when it
    #     fits, so it is DMA'd from HBM exactly once; else a lane-dense tile.
    tn = min(_round_up(tn_target, 128), np128)
    if grid_k == 1 and 2 * tk * np128 * in_itemsize <= resident_cap:
        tn = np128

    def fits(tm_, tn_):
        w = 2 * tk * tn_ * in_itemsize           # weight block (double-buffered)
        xb = 2 * tm_ * tk * in_itemsize          # x block (double-buffered)
        ob = 2 * tm_ * tn_ * out_itemsize        # output block (double-buffered)
        ac = tm_ * tn_ * 4 if grid_k > 1 else 0  # f32 accumulator scratch
        return w + xb + ob + ac <= budget

    # --- M: biggest batch tile that fits the budget.
    tm_max = min(_round_up(tm_target, m_align), _round_up(M, m_align))
    tm = tm_max
    while True:
        while tm > m_align and not fits(tm, tn):
            tm = max(m_align, _round_up(tm // 2, m_align))
        if fits(tm, tn) or tn <= 128:
            break
        tn = max(128, _round_up(tn // 2, 128))   # give up residency / shrink tile
        tm = tm_max

    # --- ensure >=2 parallel batch tiles so both v7x TensorCores get work.
    if M >= 64 and pl.cdiv(M, tm) == 1:
        tm_split = _round_up(pl.cdiv(M, 2), m_align)
        if fits(tm_split, tn):
            tm = tm_split

    return tm, tn, tk, k_pad, grid_k


# --------------------------------------------------------------- wrapper ----
def embedding_mapping_forward(x, weight, *, compute_dtype=None,
                              tm=512, tn=1024, max_single_k=4096):
    """Forward of EmbeddingMapping: x @ weight.T (nn.Linear, bias=False).

    x:       (batch, mono_dim)
    weight:  (common_dim, mono_dim)   -- native PyTorch nn.Linear layout
    compute_dtype: optional cast of the MXU operands (e.g. jnp.bfloat16 on
        v6e/v7x); accumulation stays float32, output keeps x.dtype.
        Default None keeps exact float32 semantics of the PyTorch module.
    returns  (batch, common_dim), dtype of x
    """
    M, K = x.shape
    N, K2 = weight.shape
    assert K == K2, "mono_dim mismatch between input and weight"
    out_dtype = x.dtype

    cdt = jnp.dtype(compute_dtype) if compute_dtype is not None else jnp.dtype(x.dtype)
    in_itemsize = cdt.itemsize
    out_itemsize = jnp.dtype(out_dtype).itemsize

    vmem_limit = _vmem_limit_bytes()
    budget = (vmem_limit * 4) // 5        # what the pipeline buffers may use
    resident_cap = vmem_limit // 2        # max VMEM a resident weight may take

    tm_eff, tn_eff, tk_eff, k_pad, grid_k = _pick_tiles(
        M, N, K, in_itemsize, out_itemsize,
        budget=budget, resident_cap=resident_cap,
        tm_target=tm, tn_target=tn, max_single_k=max_single_k)

    x_in, w_in = x, weight
    if compute_dtype is not None and cdt != x.dtype:
        x_in = x_in.astype(cdt)
        w_in = w_in.astype(cdt)
    if k_pad != K:
        # Only the reduction axis ever needs explicit zero padding; ragged
        # batch / common_dim edges are handled by masked boundary blocks.
        x_in = jnp.pad(x_in, ((0, 0), (0, k_pad - K)))
        w_in = jnp.pad(w_in, ((0, 0), (0, k_pad - K)))
    # One-time (small) transpose so the kernel contracts (tm,tk) x (tk,tn) on
    # the MXU with no per-step XLU transpose of the weight tile.
    w_in = w_in.T                          # (k_pad, common_dim)

    grid = (pl.cdiv(N, tn_eff), pl.cdiv(M, tm_eff), grid_k)
    kernel = _linear_kernel if grid_k == 1 else _linear_kernel_acc
    scratch = [] if grid_k == 1 else [pltpu.VMEM((tm_eff, tn_eff), jnp.float32)]

    cost = pl.CostEstimate(
        flops=2 * M * N * K,
        transcendentals=0,
        bytes_accessed=(M * K + N * K) * in_itemsize + M * N * out_itemsize,
    )

    return pl.pallas_call(
        kernel,
        out_shape=jax.ShapeDtypeStruct((M, N), out_dtype),
        grid_spec=pltpu.PrefetchScalarGridSpec(
            num_scalar_prefetch=0,
            grid=grid,
            in_specs=[
                pl.BlockSpec((tm_eff, tk_eff), lambda j, i, k: (i, k)),  # x
                pl.BlockSpec((tk_eff, tn_eff), lambda j, i, k: (k, j)),  # w.T
            ],
            out_specs=pl.BlockSpec((tm_eff, tn_eff), lambda j, i, k: (i, j)),
            scratch_shapes=scratch,
        ),
        compiler_params=pltpu.CompilerParams(
            dimension_semantics=("parallel", "parallel", "arbitrary"),
            vmem_limit_bytes=vmem_limit,
        ),
        cost_estimate=cost,
    )(x_in, w_in)


def xavier_uniform(key, shape):
    # PyTorch xavier_uniform_ for a 2-D weight (fan_out, fan_in).
    fan_out, fan_in = shape
    bound = (6.0 / (fan_in + fan_out)) ** 0.5
    return jax.random.uniform(key, shape, jnp.float32, -bound, bound)


if __name__ == "__main__":
    keys = jax.random.split(jax.random.PRNGKey(0), 8)

    # 1) Small module-consistent shapes (mono_dim=256 -> common_dim=128).
    mono_dim, common_dim, batch = 256, 128, 16
    w1 = xavier_uniform(keys[0], (common_dim, mono_dim))
    x1 = jax.random.normal(keys[1], (batch, mono_dim), jnp.float32)
    o1 = jax.block_until_ready(embedding_mapping_forward(x1, w1))
    assert o1.shape == (batch, common_dim)
    assert jnp.allclose(o1, x1 @ w1.T, atol=1e-4, rtol=1e-4)

    # 2) Ragged shapes: unaligned batch / common_dim / mono_dim (masked edge
    #    blocks; only K is zero-padded, x is never padded along the batch axis).
    w2 = xavier_uniform(keys[2], (200, 300))
    x2 = jax.random.normal(keys[3], (20, 300), jnp.float32)
    o2 = jax.block_until_ready(embedding_mapping_forward(x2, w2))
    assert o2.shape == (20, 200)
    assert jnp.allclose(o2, x2 @ w2.T, atol=1e-3, rtol=1e-3)

    # 3) Larger case: VMEM-resident weight (fetched once) and the batch split
    #    into two parallel tiles (both TensorCores on v7x).
    w3 = xavier_uniform(keys[4], (768, 1024))
    x3 = jax.random.normal(keys[5], (384, 1024), jnp.float32)
    o3 = jax.block_until_ready(embedding_mapping_forward(x3, w3))
    assert o3.shape == (384, 768)
    assert jnp.allclose(o3, x3 @ w3.T, atol=1e-3, rtol=1e-3)

    # 4) Forced K-split path (exercises the f32 accumulator kernel).
    w4 = xavier_uniform(keys[6], (256, 1024))
    x4 = jax.random.normal(keys[7], (64, 1024), jnp.float32)
    o4 = jax.block_until_ready(embedding_mapping_forward(x4, w4, max_single_k=512))
    assert o4.shape == (64, 256)
    assert jnp.allclose(o4, x4 @ w4.T, atol=1e-3, rtol=1e-3)

    # 5) Optional bfloat16-operand path (half the HBM traffic, bf16 MXU rate).
    o5 = jax.block_until_ready(
        embedding_mapping_forward(x3, w3, compute_dtype=jnp.bfloat16))
    assert o5.shape == (384, 768)
    assert jnp.allclose(o5, x3 @ w3.T, atol=5e-2, rtol=5e-2)

    # TODO(synk): orthogonalize() is a training-time weight update, not part of
    # the forward pass; it is intentionally not implemented as a kernel here.
    print("KERNEL_OK")
</pallas_src>

<mosaic_0001>
module attributes {stable_mosaic.version = 11 : i64} {
  func.func @_linear_kernel(%arg0: i32, %arg1: i32, %arg2: i32, %arg3: memref<16x256xf32, #tpu.memory_space<vmem>>, %arg4: memref<256x128xf32, #tpu.memory_space<vmem>>, %arg5: memref<16x128xf32, #tpu.memory_space<vmem>>) attributes {dimension_semantics = [#tpu.dimension_semantics<parallel>, #tpu.dimension_semantics<parallel>, #tpu.dimension_semantics<arbitrary>], iteration_bounds = array<i64: 1, 1, 1>, scalar_prefetch = 0 : i64, scratch_operands = 0 : i64, tpu.core_type = #tpu.core_type<tc>, window_params = [{transform_indices = @transform_0, window_bounds = array<i64: 16, 256>}, {transform_indices = @transform_1, window_bounds = array<i64: 256, 128>}, {transform_indices = @transform_2, window_bounds = array<i64: 16, 128>}]} {
    %c0 = arith.constant 0 : index
    %c0_0 = arith.constant 0 : index
    %0 = vector.load %arg3[%c0, %c0_0] : memref<16x256xf32, #tpu.memory_space<vmem>>, vector<16x256xf32>
    %c0_1 = arith.constant 0 : index
    %c0_2 = arith.constant 0 : index
    %1 = vector.load %arg4[%c0_1, %c0_2] : memref<256x128xf32, #tpu.memory_space<vmem>>, vector<256x128xf32>
    %cst = arith.constant dense<0.000000e+00> : vector<16x128xf32>
    %2 = tpu.matmul %0, %1, %cst {dimension_numbers = #tpu.dot_dimension_numbers<[1], [0], [0], [1], [0, 0, 1, 1], [], []>} : vector<16x256xf32>, vector<256x128xf32>, vector<16x128xf32> -> vector<16x128xf32>
    %c0_3 = arith.constant 0 : index
    %c0_4 = arith.constant 0 : index
    %3 = vector.load %arg5[%c0_3, %c0_4] : memref<16x128xf32, #tpu.memory_space<vmem>>, vector<16x128xf32>
    tpu.vector_store %arg5[%c0_3, %c0_4], %2 {strides = array<i32>} : memref<16x128xf32, #tpu.memory_space<vmem>>, vector<16x128xf32>,
    return
  }
  func.func @transform_0(%arg0: i32, %arg1: i32, %arg2: i32) -> (i32, i32) {
    %c0_i32 = arith.constant 0 : i32
    return %arg1, %arg2 : i32, i32
  }
  func.func @transform_1(%arg0: i32, %arg1: i32, %arg2: i32) -> (i32, i32) {
    %c0_i32 = arith.constant 0 : i32
    return %arg2, %arg0 : i32, i32
  }
  func.func @transform_2(%arg0: i32, %arg1: i32, %arg2: i32) -> (i32, i32) {
    %c0_i32 = arith.constant 0 : i32
    return %arg1, %arg0 : i32, i32
  }
}

</mosaic_0001>

<llo_original>
// kernel: tpu_custom_call.1
$region0: #{tpu_custom_call.1}
  #allocation0 [shape = 'u32[]', space=smem, size = 0x4, offset = 0x4, fixed_abs, tag = 'smem constant byte address 0x4 - core index']
  #allocation1 [shape = 'u32[72,128]{1,0:T(1,128)}', space=vmem, size = 0x9000, scoped, tag = 'internal scratch']
  %s0 = inlined_call_operand.hbm [shape: f32[16,256], index: 0, kind: input, shape index: {}]
  %s1 = inlined_call_operand.hbm [shape: f32[256,128], index: 1, kind: input, shape index: {}]
  %s2 = inlined_call_operand.hbm [shape: f32[16,128], index: 2, kind: output, shape index: {}]
  %s3 = sld [smem:[#allocation0]]
  $region26: #{tpu_custom_call.1} parent=0
    _
  %s5 = ssub.s32 1, %s3
  %s6 = scalar_select 0, %s5, %s3
  $region1: #{tpu_custom_call.1} parent=0
    #allocation2 [shape = 'u8[16384]{0}', space=vmem, size = 0x4000, scoped, tag = 'input window, operand 0, single buffered']
    #allocation3 [shape = 's32[1]{0}', space=sflag, size = 0x4, scoped, tag = 'scoped memory for tpu_custom_call.1']
    #allocation4 [shape = 's32[1]{0}', space=sflag, size = 0x4, scoped, tag = 'scoped memory for tpu_custom_call.1']
    #allocation5 [shape = 'u8[131072]{0}', space=vmem, size = 0x20000, scoped, tag = 'input window, operand 1, single buffered']
    #allocation6 [shape = 's32[1]{0}', space=sflag, size = 0x4, scoped, tag = 'scoped memory for tpu_custom_call.1']
    #allocation7 [shape = 'u8[8192]{0}', space=vmem, size = 0x2000, scoped, tag = 'output window, operand 0, single buffered']
    %7 = vsyncpa [#allocation3], 0
    %8 = vsyncpa [#allocation6], 0
    %9 = vsyncpa [#allocation4], 0
    // Predicated region
    $region2: #{tpu_custom_call.1} parent=1 // pred_check
      _
    $region3: #{tpu_custom_call.1} parent=1 // pred_check_branch
      %11 = sbr.rel (0) target = $region5
    $region4: #{tpu_custom_call.1} parent=1 // pred_region
      %13 = vsyncadd [#allocation3], 0
      %s14 = sshll.u32 %s0, 4
      %s15 = int_to_ptr.hbm [resolvable:$true] %s14
      %s16 = sshll.u32 [#allocation2], 4
      %s17 = int_to_ptr.vmem [resolvable:$true] %s16
      %22 = dma.hbm_to_vmem [thread:$0]  %s15, 512, %s17, [#allocation3], 256, 256, 16
    $region5: #{tpu_custom_call.1} parent=1 // pred_fallthru
      _
    // Predicated region
    $region6: #{tpu_custom_call.1} parent=1 // pred_check
      _
    $region7: #{tpu_custom_call.1} parent=1 // pred_check_branch
      %24 = sbr.rel (0) target = $region9
    $region8: #{tpu_custom_call.1} parent=1 // pred_region
      %26 = vsyncadd [#allocation6], 0
      %s27 = sshll.u32 %s1, 4
      %s28 = int_to_ptr.hbm [resolvable:$true] %s27
      %s29 = sshll.u32 [#allocation5], 4
      %s30 = int_to_ptr.vmem [resolvable:$true] %s29
      %35 = dma.hbm_to_vmem [thread:$0]  %s28, 4096, %s30, [#allocation6], 128, 128, 8
    $region9: #{tpu_custom_call.1} parent=1 // pred_fallthru
      _
    // Predicated region
    $region10: #{tpu_custom_call.1} parent=1 // pred_check
      _
    $region11: #{tpu_custom_call.1} parent=1 // pred_check_branch
      %37 = sbr.rel (0) target = $region13
    $region12: #{tpu_custom_call.1} parent=1 // pred_region
      %39 = dma.done [#allocation3], 512
    $region13: #{tpu_custom_call.1} parent=1 // pred_fallthru
      _
    // Predicated region
    $region14: #{tpu_custom_call.1} parent=1 // pred_check
      _
    $region15: #{tpu_custom_call.1} parent=1 // pred_check_branch
      %41 = sbr.rel (0) target = $region17
    $region16: #{tpu_custom_call.1} parent=1 // pred_region
      %43 = dma.done [#allocation6], 4096
    $region17: #{tpu_custom_call.1} parent=1 // pred_fallthru
      _
    %v44 = vld [vmem:[#allocation2] sm:$0xff]
    %v45 = vld [vmem:[#allocation2 + $0x8] sm:$0xff]
    %v46 = vld [vmem:[#allocation2 + $0x10] sm:$0xff]
    %v47 = vld [vmem:[#allocation2 + $0x18] sm:$0xff]
    %v48 = vld [vmem:[#allocation5] sm:$0xff]
    %v49 = vld [vmem:[#allocation5 + $0x8] sm:$0xff]
    %v50 = vld [vmem:[#allocation5 + $0x10] sm:$0xff]
    %v51 = vld [vmem:[#allocation5 + $0x18] sm:$0xff]
    %v52 = vld [vmem:[#allocation5 + $0x20] sm:$0xff]
    %v53 = vld [vmem:[#allocation5 + $0x28] sm:$0xff]
    %v54 = vld [vmem:[#allocation5 + $0x30] sm:$0xff]
    %v55 = vld [vmem:[#allocation5 + $0x38] sm:$0xff]
    %v56 = vld [vmem:[#allocation5 + $0x40] sm:$0xff]
    %v57 = vld [vmem:[#allocation5 + $0x48] sm:$0xff]
    %v58 = vld [vmem:[#allocation5 + $0x50] sm:$0xff]
    %v59 = vld [vmem:[#allocation5 + $0x58] sm:$0xff]
    %v60 = vld [vmem:[#allocation5 + $0x60] sm:$0xff]
    %v61 = vld [vmem:[#allocation5 + $0x68] sm:$0xff]
    %v62 = vld [vmem:[#allocation5 + $0x70] sm:$0xff]
    %v63 = vld [vmem:[#allocation5 + $0x78] sm:$0xff]
    %v64 = vld [vmem:[#allocation5 + $0x80] sm:$0xff]
    %v65 = vld [vmem:[#allocation5 + $0x88] sm:$0xff]
    %v66 = vld [vmem:[#allocation5 + $0x90] sm:$0xff]
    %v67 = vld [vmem:[#allocation5 + $0x98] sm:$0xff]
    %v68 = vld [vmem:[#allocation5 + $0xa0] sm:$0xff]
    %v69 = vld [vmem:[#allocation5 + $0xa8] sm:$0xff]
    %v70 = vld [vmem:[#allocation5 + $0xb0] sm:$0xff]
    %v71 = vld [vmem:[#allocation5 + $0xb8] sm:$0xff]
    %v72 = vld [vmem:[#allocation5 + $0xc0] sm:$0xff]
    %v73 = vld [vmem:[#allocation5 + $0xc8] sm:$0xff]
    %v74 = vld [vmem:[#allocation5 + $0xd0] sm:$0xff]
    %v75 = vld [vmem:[#allocation5 + $0xd8] sm:$0xff]
    %v76 = vld [vmem:[#allocation5 + $0xe0] sm:$0xff]
    %v77 = vld [vmem:[#allocation5 + $0xe8] sm:$0xff]
    %v78 = vld [vmem:[#allocation5 + $0xf0] sm:$0xff]
    %v79 = vld [vmem:[#allocation5 + $0xf8] sm:$0xff]
    %80 = vmatpush.msra.mxu0 %v63
    %81 = vmatpush.msra.mxu0 %v62
    %82 = vmatpush.msra.mxu0 %v61
    %83 = vmatpush.msra.mxu0 %v60
    %84 = vmatpush.msra.mxu0 %v59
    %85 = vmatpush.msra.mxu0 %v58
    %86 = vmatpush.msra.mxu0 %v57
    %87 = vmatpush.msra.mxu0 %v56
    %88 = vmatpush.msra.mxu0 %v55
    %89 = vmatpush.msra.mxu0 %v54
    %90 = vmatpush.msra.mxu0 %v53
    %91 = vmatpush.msra.mxu0 %v52
    %92 = vmatpush.msra.mxu0 %v51
    %93 = vmatpush.msra.mxu0 %v50
    %94 = vmatpush.msra.mxu0 %v49
    %95 = vmatpush.msra.mxu0 %v48
    %96 = vmatmul.f32.gmra.mxu0 %v44
    %v97 = vpop.f32.mrf.mxu0
    %v98 = vadd.f32 0.0, %v97
    %99 = vmatmul.f32.gmra.mxu0 %v46
    %v100 = vpop.f32.mrf.mxu0
    %v101 = vadd.f32 0.0, %v100
    %102 = vdwg.mxu0
    %103 = vmatpush.msra.mxu0 %v79
    %104 = vmatpush.msra.mxu0 %v78
    %105 = vmatpush.msra.mxu0 %v77
    %106 = vmatpush.msra.mxu0 %v76
    %107 = vmatpush.msra.mxu0 %v75
    %108 = vmatpush.msra.mxu0 %v74
    %109 = vmatpush.msra.mxu0 %v73
    %110 = vmatpush.msra.mxu0 %v72
    %111 = vmatpush.msra.mxu0 %v71
    %112 = vmatpush.msra.mxu0 %v70
    %113 = vmatpush.msra.mxu0 %v69
    %114 = vmatpush.msra.mxu0 %v68
    %115 = vmatpush.msra.mxu0 %v67
    %116 = vmatpush.msra.mxu0 %v66
    %117 = vmatpush.msra.mxu0 %v65
    %118 = vmatpush.msra.mxu0 %v64
    %119 = vmatmul.f32.gmra.mxu0 %v45
    %v120 = vpop.f32.mrf.mxu0
    %v121 = vadd.f32 %v98, %v120
    %122 = vmatmul.f32.gmra.mxu0 %v47
    %v123 = vpop.f32.mrf.mxu0
    %v124 = vadd.f32 %v101, %v123
    %125 = vdwg.mxu0
    %126 = vst [vmem:[#allocation7] sm:$0xff] %v121
    %127 = vst [vmem:[#allocation7 + $0x8] sm:$0xff] %v124
    // Predicated region
    $region18: #{tpu_custom_call.1} parent=1 // pred_check
      _
    $region19: #{tpu_custom_call.1} parent=1 // pred_check_branch
      %129 = sbr.rel (0) target = $region21
    $region20: #{tpu_custom_call.1} parent=1 // pred_region
      %131 = vsyncadd [#allocation4], 0
      %s132 = sshll.u32 [#allocation7], 4
      %s133 = int_to_ptr.vmem [resolvable:$true] %s132
      %s134 = sshll.u32 %s2, 4
      %s135 = int_to_ptr.hbm [resolvable:$true] %s134
      %140 = dma.vmem_to_hbm [thread:$0]  %s133, 256, %s135, [#allocation4], 128, 128, 8
    $region21: #{tpu_custom_call.1} parent=1 // pred_fallthru
      _
    // Predicated region
    $region22: #{tpu_custom_call.1} parent=1 // pred_check
      _
    $region23: #{tpu_custom_call.1} parent=1 // pred_check_branch
      %142 = sbr.rel (0) target = $region25
    $region24: #{tpu_custom_call.1} parent=1 // pred_region
      %144 = dma.done [#allocation4], 256
    $region25: #{tpu_custom_call.1} parent=1 // pred_fallthru
      _
    %145 = vsyncpa [#allocation3], 1
    %146 = vsyncpa [#allocation6], 1
    %147 = vsyncpa [#allocation4], 1

</llo_original>
